<compile_context>
chip_gen: v7x
topology: tpu7x:2x2x1
jax: 0.10.0
libtpu: 0.0.40
codegen_flags: <defaults>
</compile_context>

<pallas_src>
import functools

import jax
import jax.numpy as jnp
from jax.experimental import pallas as pl
from jax.experimental.pallas import tpu as pltpu


_TARGET_BLOCK_BYTES = 4 * 1024 * 1024    # ~4 MiB x block: bandwidth plateau
_MAX_FOOTPRINT_BYTES = 24 * 1024 * 1024  # in(2x) + out(2x) + f32 intermediates
_TARGET_GRID_STEPS = 8                   # >= 4 steps per TensorCore on v7x


def _rmsnorm_kernel(x_ref, w_ref, o_ref, *, eps: float):
    # Load tile, compute entirely in float32 (matches torch's x.float()).
    x = x_ref[...].astype(jnp.float32)
    ms = jnp.mean(x * x, axis=-1, keepdims=True)   # XLU cross-lane reduce
    inv = jax.lax.rsqrt(ms + eps)                  # EUP rsqrt
    w = w_ref[...].astype(jnp.float32)             # (1, dim), resident
    # Single downcast at the end; weight multiply stays in f32.
    o_ref[...] = (x * inv * w).astype(o_ref.dtype)


def _sublane_multiple(dtype) -> int:
    # Rows per packed sublane group: 8 for 32-bit, 16 for bf16/f16, 32 for 8-bit.
    itemsize = jnp.dtype(dtype).itemsize
    return max(8, 32 // max(itemsize, 1))


def _pick_row_tile(rows: int, dim: int, dtype) -> int:
    """Row tile targeting ~4 MiB blocks, a ~24 MiB footprint, and >=8 grid steps."""
    itemsize = jnp.dtype(dtype).itemsize
    sublane = _sublane_multiple(dtype)

    # 1) Bandwidth plateau: ~4 MiB per x block (no fraction-of-VMEM sizing).
    row_tile = max(sublane, _TARGET_BLOCK_BYTES // max(dim * itemsize, 1))

    # 2) Footprint cap: double-buffered input + output (4 * itemsize bytes/elem)
    #    plus ~3 f32 intermediates (x_f32, x*x, product) per row.
    bytes_per_row = dim * (4 * itemsize + 3 * 4)
    row_tile = min(row_tile, max(sublane, _MAX_FOOTPRINT_BYTES // max(bytes_per_row, 1)))

    # 3) Enough grid steps for DMA overlap and an even 2-TensorCore split on
    #    v7x: when rows allow, clamp so the grid has >= _TARGET_GRID_STEPS steps.
    per_step = (pl.cdiv(rows, _TARGET_GRID_STEPS) // sublane) * sublane
    if per_step >= sublane:
        row_tile = min(row_tile, per_step)

    # 4) Never exceed the row count (rounded up to a sublane multiple).
    row_tile = min(row_tile, pl.cdiv(rows, sublane) * sublane)

    # Sublane alignment.
    row_tile = max(sublane, (row_tile // sublane) * sublane)
    return row_tile


def rmsnorm(x: jax.Array, weight: jax.Array, eps: float = 1e-6,
            row_tile: int | None = None) -> jax.Array:
    """RMSNorm over the last axis of x, scaled by `weight` (shape (dim,))."""
    orig_shape = x.shape
    dim = orig_shape[-1]
    assert weight.shape == (dim,)

    x2d = x.reshape(-1, dim)
    rows = x2d.shape[0]
    if row_tile is None:
        row_tile = _pick_row_tile(rows, dim, x.dtype)

    w2d = weight.reshape(1, dim)

    # Ragged grid: no jnp.pad / slice round-trip through HBM. Garbage rows in
    # the last block only feed a row-local reduction and are masked on writeback.
    grid = (pl.cdiv(rows, row_tile),)

    # Scoped VMEM limit sized from the chosen tiles (double-buffered in + out,
    # f32 intermediates, small headroom). The footprint cap in _pick_row_tile
    # keeps this well under 64 MiB, so no clamp against physical VMEM is needed.
    itemsize = jnp.dtype(x.dtype).itemsize
    pipeline_bytes = 2 * 2 * row_tile * dim * itemsize
    intermediate_bytes = 3 * row_tile * dim * 4
    vmem_limit = int(min(max(pipeline_bytes + intermediate_bytes + (4 << 20),
                             16 << 20), 48 << 20))

    # NOTE: at production dims (>=128-lane multiples) the output is lane-dense;
    # for tiny dims the full-extent block is still correct (masked stores).
    out = pl.pallas_call(
        functools.partial(_rmsnorm_kernel, eps=eps),
        out_shape=jax.ShapeDtypeStruct((rows, dim), x.dtype),
        grid_spec=pltpu.PrefetchScalarGridSpec(
            num_scalar_prefetch=0,
            grid=grid,
            in_specs=[
                pl.BlockSpec((row_tile, dim), lambda i: (i, 0)),   # x tile
                pl.BlockSpec((1, dim), lambda i: (0, 0)),          # weight (resident)
            ],
            out_specs=pl.BlockSpec((row_tile, dim), lambda i: (i, 0)),
        ),
        compiler_params=pltpu.CompilerParams(
            dimension_semantics=("parallel",),
            vmem_limit_bytes=vmem_limit,
        ),
    )(x2d, w2d)

    return out.reshape(orig_shape)


def rmsnorm_ref(x, weight, eps=1e-6):
    # Pure-JAX reference matching the kernel semantics: f32 compute, f32 weight
    # multiply, single downcast to x.dtype.
    xf = x.astype(jnp.float32)
    inv = jax.lax.rsqrt(jnp.mean(xf * xf, axis=-1, keepdims=True) + eps)
    return (xf * inv * weight.astype(jnp.float32)).astype(x.dtype)


if __name__ == "__main__":
    key = jax.random.PRNGKey(0)
    batch, seq, hidden = 2, 8, 32

    # Main smoke test (shapes implied by the module usage).
    x = jax.random.normal(key, (batch, seq, hidden), dtype=jnp.float32)
    weight = jnp.ones((hidden,), dtype=jnp.float32)   # nn.Parameter(torch.ones(dim))
    out = jax.block_until_ready(rmsnorm(x, weight, eps=1e-6))
    ref = rmsnorm_ref(x, weight, eps=1e-6)
    assert out.shape == x.shape and out.dtype == x.dtype
    assert jnp.allclose(out, ref, atol=1e-5, rtol=1e-5), "mismatch vs reference"

    # Ragged rows, tiny dim (full-extent block path, masked partial writeback).
    x2 = jax.random.normal(jax.random.PRNGKey(1), (3, 5, hidden), dtype=jnp.float32)
    out2 = jax.block_until_ready(rmsnorm(x2, weight, eps=1e-6))
    assert jnp.allclose(out2, rmsnorm_ref(x2, weight, eps=1e-6),
                        atol=1e-5, rtol=1e-5), "ragged (small dim) mismatch"

    # Ragged rows with dim >= 128, multi-step grid: exercises the lane-dense
    # masked-store path actually used at production sizes.
    dim3 = 256
    w3 = jnp.ones((dim3,), dtype=jnp.float32)
    x3 = jax.random.normal(jax.random.PRNGKey(2), (4, 37, dim3), dtype=jnp.float32)
    out3 = jax.block_until_ready(rmsnorm(x3, w3, eps=1e-6))
    assert jnp.allclose(out3, rmsnorm_ref(x3, w3, eps=1e-6),
                        atol=1e-5, rtol=1e-5), "ragged (dim=256) mismatch"

    # bf16 activations with f32 weight, ragged last block.
    x4 = jax.random.normal(jax.random.PRNGKey(3), (5, 20, dim3),
                           dtype=jnp.float32).astype(jnp.bfloat16)
    out4 = jax.block_until_ready(rmsnorm(x4, w3, eps=1e-6))
    ref4 = rmsnorm_ref(x4, w3, eps=1e-6)
    assert out4.dtype == jnp.bfloat16
    assert jnp.allclose(out4.astype(jnp.float32), ref4.astype(jnp.float32),
                        atol=2e-2, rtol=2e-2), "bf16 mismatch vs reference"

    print("KERNEL_OK")
</pallas_src>

<mosaic_0001>
module attributes {stable_mosaic.version = 11 : i64} {
  func.func @_rmsnorm_kernel(%arg0: i32, %arg1: memref<16x32xf32, #tpu.memory_space<vmem>>, %arg2: memref<1x32xf32, #tpu.memory_space<vmem>>, %arg3: memref<16x32xf32, #tpu.memory_space<vmem>>) attributes {dimension_semantics = [#tpu.dimension_semantics<parallel>], iteration_bounds = array<i64: 1>, scalar_prefetch = 0 : i64, scratch_operands = 0 : i64, tpu.core_type = #tpu.core_type<tc>, window_params = [{transform_indices = @transform_0, window_bounds = array<i64: 16, 32>}, {pipeline_mode = #tpu.pipeline_mode<synchronous>, transform_indices = @transform_1, window_bounds = array<i64: 1, 32>}, {transform_indices = @transform_2, window_bounds = array<i64: 16, 32>}]} {
    %c0 = arith.constant 0 : index
    %c0_0 = arith.constant 0 : index
    %0 = vector.load %arg1[%c0, %c0_0] : memref<16x32xf32, #tpu.memory_space<vmem>>, vector<16x32xf32>
    %1 = arith.mulf %0, %0 : vector<16x32xf32>
    %cst = arith.constant dense<0.000000e+00> : vector<16xf32>
    %2 = vector.multi_reduction <add>, %1, %cst [1] : vector<16x32xf32> to vector<16xf32>
    %3 = vector.shape_cast %2 : vector<16xf32> to vector<16x1xf32>
    %cst_1 = arith.constant 3.200000e+01 : f32
    %4 = vector.broadcast %cst_1 : f32 to vector<16x1xf32>
    %5 = arith.divf %3, %4 : vector<16x1xf32>
    %cst_2 = arith.constant 9.99999997E-7 : f32
    %6 = vector.broadcast %cst_2 : f32 to vector<16x1xf32>
    %7 = arith.addf %5, %6 : vector<16x1xf32>
    %8 = math.rsqrt %7 : vector<16x1xf32>
    %c0_3 = arith.constant 0 : index
    %c0_4 = arith.constant 0 : index
    %9 = vector.load %arg2[%c0_3, %c0_4] : memref<1x32xf32, #tpu.memory_space<vmem>>, vector<1x32xf32>
    %10 = vector.broadcast %8 : vector<16x1xf32> to vector<16x32xf32>
    %11 = arith.mulf %0, %10 : vector<16x32xf32>
    %12 = vector.broadcast %9 : vector<1x32xf32> to vector<16x32xf32>
    %13 = arith.mulf %11, %12 : vector<16x32xf32>
    %c0_5 = arith.constant 0 : index
    %c0_6 = arith.constant 0 : index
    %14 = vector.load %arg3[%c0_5, %c0_6] : memref<16x32xf32, #tpu.memory_space<vmem>>, vector<16x32xf32>
    tpu.vector_store %arg3[%c0_5, %c0_6], %13 {strides = array<i32>} : memref<16x32xf32, #tpu.memory_space<vmem>>, vector<16x32xf32>,
    return
  }
  func.func @transform_0(%arg0: i32) -> (i32, i32) {
    %c0_i32 = arith.constant 0 : i32
    %c0_i32_0 = arith.constant 0 : i32
    return %arg0, %c0_i32 : i32, i32
  }
  func.func @transform_1(%arg0: i32) -> (i32, i32) {
    %c0_i32 = arith.constant 0 : i32
    %c0_i32_0 = arith.constant 0 : i32
    %c0_i32_1 = arith.constant 0 : i32
    return %c0_i32, %c0_i32_0 : i32, i32
  }
  func.func @transform_2(%arg0: i32) -> (i32, i32) {
    %c0_i32 = arith.constant 0 : i32
    %c0_i32_0 = arith.constant 0 : i32
    return %arg0, %c0_i32 : i32, i32
  }
}

</mosaic_0001>

<llo_original>
// kernel: tpu_custom_call.1
$region0: #{tpu_custom_call.1}
  #allocation0 [shape = 'u32[]', space=smem, size = 0x4, offset = 0x4, fixed_abs, tag = 'smem constant byte address 0x4 - core index']
  #allocation1 [shape = 'u32[144,128]{1,0:T(1,128)}', space=vmem, size = 0x12000, scoped, tag = 'internal scratch']
  %s0 = inlined_call_operand.hbm [shape: f32[16,32], index: 0, kind: input, shape index: {}]
  %s1 = inlined_call_operand.vmem [shape: f32[1,32], index: 1, kind: input, shape index: {}]
  %s2 = inlined_call_operand.hbm [shape: f32[16,32], index: 2, kind: output, shape index: {}]
  %s3 = sld [smem:[#allocation0]]
  $region22: #{tpu_custom_call.1} parent=0
    _
  %s5 = ssub.s32 1, %s3
  %s6 = scalar_select 0, %s5, %s3
  $region1: #{tpu_custom_call.1} parent=0
    #allocation2 [shape = 'u8[8192]{0}', space=vmem, size = 0x2000, scoped, tag = 'input window, operand 0, single buffered']
    #allocation3 [shape = 's32[1]{0}', space=sflag, size = 0x4, scoped, tag = 'scoped memory for tpu_custom_call.1']
    #allocation4 [shape = 's32[1]{0}', space=sflag, size = 0x4, scoped, tag = 'scoped memory for tpu_custom_call.1']
    #allocation5 [shape = 'u8[8192]{0}', space=vmem, size = 0x2000, scoped, tag = 'output window, operand 0, single buffered']
    %7 = vsyncpa [#allocation3], 0
    %8 = vsyncpa [#allocation4], 0
    // Predicated region
    $region2: #{tpu_custom_call.1} parent=1 // pred_check
      _
    $region3: #{tpu_custom_call.1} parent=1 // pred_check_branch
      %10 = sbr.rel (0) target = $region5
    $region4: #{tpu_custom_call.1} parent=1 // pred_region
      %s12 = ssub.s32 256, 256
      %13 = vsyncadd [#allocation3], %s12
      %s14 = sshll.u32 [#allocation2], 4
      %s15 = int_to_ptr.vmem [resolvable:$true] %s14
      %20 = dma.hbm_to_vmem [thread:$0]  %s0, 256, %s15, [#allocation3], 128, 128, 8
    $region5: #{tpu_custom_call.1} parent=1 // pred_fallthru
      _
    // Predicated region
    $region6: #{tpu_custom_call.1} parent=1 // pred_check
      _
    $region7: #{tpu_custom_call.1} parent=1 // pred_check_branch
      %22 = sbr.rel (0) target = $region9
    $region8: #{tpu_custom_call.1} parent=1 // pred_region
      _
    $region9: #{tpu_custom_call.1} parent=1 // pred_fallthru
      _
    // Predicated region
    $region10: #{tpu_custom_call.1} parent=1 // pred_check
      _
    $region11: #{tpu_custom_call.1} parent=1 // pred_check_branch
      %24 = sbr.rel (0) target = $region13
    $region12: #{tpu_custom_call.1} parent=1 // pred_region
      %25 = dma.done [#allocation3], 256
    $region13: #{tpu_custom_call.1} parent=1 // pred_fallthru
      _
    %v26 = vld [vmem:[#allocation2] sm:$0xff]
    %v27 = vld [vmem:[#allocation2 + $0x8] sm:$0xff]
    %v28 = vmul.f32 %v26, %v26
    %v29 = vmul.f32 %v27, %v27
    %vm30 = vcmask 261120
    %v31 = vsel %vm30, %v28, 0.0
    %32 = vadd.xlane.f32.xlu0 %v31
    %v33 = vpop.xlane.xlu0 %32
    %v34 = vsel %vm30, %v29, 0.0
    %35 = vadd.xlane.f32.xlu0 %v34
    %v36 = vpop.xlane.xlu0 %35
    %v37 = vrcp.pop 32.0
    %v38 = vmul.f32 %v33, %v37
    %v39 = vmul.f32 %v36, %v37
    %v40 = vadd.f32 %v38, 1e-06
    %v41 = vadd.f32 %v39, 1e-06
    %v42 = vrsqrt.pop %v40
    %v43 = vrsqrt.pop %v41
    %v44 = vld [vmem:[%s1] sm:$0x1]
    %v45 = vmul.f32 %v26, %v42
    %v46 = vmul.f32 %v27, %v43
    %v48 = vlaneseq
    %v49 = vshrl.u32 %v48, 7
    %v50 = vsub.s32 0, %v49
    %v51 = vrot.slane %v44, %v50
    %v53 = vmul.f32 %v45, %v51
    %v54 = vmul.f32 %v46, %v51
    %55 = vst.msk [vmem:[#allocation5] sm:$0xff] %vm30, %v53
    %56 = vst.msk [vmem:[#allocation5 + $0x8] sm:$0xff] %vm30, %v54
    // Predicated region
    $region14: #{tpu_custom_call.1} parent=1 // pred_check
      _
    $region15: #{tpu_custom_call.1} parent=1 // pred_check_branch
      %58 = sbr.rel (0) target = $region17
    $region16: #{tpu_custom_call.1} parent=1 // pred_region
      %s60 = ssub.s32 256, 256
      %61 = vsyncadd [#allocation4], %s60
      %s62 = sshll.u32 [#allocation5], 4
      %s63 = int_to_ptr.vmem [resolvable:$true] %s62
      %68 = dma.vmem_to_hbm [thread:$0]  %s63, 256, %s2, [#allocation4], 128, 128, 8
    $region17: #{tpu_custom_call.1} parent=1 // pred_fallthru
      _
    // Predicated region
    $region18: #{tpu_custom_call.1} parent=1 // pred_check
      _
    $region19: #{tpu_custom_call.1} parent=1 // pred_check_branch
      %70 = sbr.rel (0) target = $region21
    $region20: #{tpu_custom_call.1} parent=1 // pred_region
      %71 = dma.done [#allocation4], 256
    $region21: #{tpu_custom_call.1} parent=1 // pred_fallthru
      _
    %72 = vsyncpa [#allocation3], 1
    %73 = vsyncpa [#allocation4], 1

</llo_original>
